<compile_context>
chip_gen: v7x
topology: tpu7x:2x2x1
jax: 0.10.0
libtpu: 0.0.40
codegen_flags: <defaults>
</compile_context>

<pallas_src>
import jax
import jax.numpy as jnp
from jax.experimental import pallas as pl
from jax.experimental.pallas import tpu as pltpu


def _round_up(n, m):
    return (n + m - 1) // m * m


# -----------------------------------------------------------------------------
# Kernel: one batch tile of   out = relu(x @ w1^T + b1) @ w2^T + b2
# -----------------------------------------------------------------------------
def mlp_kernel(x_ref, w1t_ref, bw_ref, b2_ref, o_ref):
    # fc1: standard MXU orientation (tile_b, d) @ (d, hid); w1 was transposed
    # once in the wrapper, so no per-tile transpose of the streaming x tile.
    h = jnp.dot(x_ref[...], w1t_ref[...], preferred_element_type=jnp.float32)

    b1 = bw_ref[0:1, :]                                  # (1, hid) row 0
    w2 = bw_ref[1:2, :]                                  # (1, hid) row 1
    h = jnp.maximum(h + b1, 0.0)                         # bias + ReLU on the VPU

    # fc2 is an N=1 matmul (>99% wasted MXU lanes) -> VPU multiply + XLU reduce.
    o = jnp.sum(h * w2, axis=1, keepdims=True)           # (tile_b, 1)
    o_ref[...] = (o + b2_ref[0]).astype(jnp.float32)     # torch .float() -> f32


# -----------------------------------------------------------------------------
# Wrapper-side sizing helpers
# -----------------------------------------------------------------------------
def _vmem_budget_bytes():
    """Per-generation scoped-VMEM limit: ~75% of physical, capped at 100 MiB.

    v7x (64 MiB/TC) -> 48 MiB; v5e/v6e (128 MiB) -> 96 MiB (raising the
    16/32 MiB default scoped limits). Falls back to the v7x-safe number.
    """
    try:
        phys = pltpu.get_tpu_info().vmem_capacity_bytes
    except Exception:
        phys = 64 * 1024 * 1024                 # conservative: v7x per-TC VMEM
    return max(32 << 20, min(int(phys * 3 // 4), 100 << 20))


def _pick_tile_b(B, d, hid, budget_bytes):
    """Largest batch tile whose *layout-padded* VMEM footprint fits the budget.

    Lane dims round up to 128, sublane dims to 8 (vreg tiling). x and the
    output are double-buffered by the pipeliner; the constant-index weights are
    single-buffered (Buffered(1)); the (tile_b, hid) intermediate counts once.
    """
    d_lane = _round_up(d, 128)
    hid_lane = _round_up(hid, 128)
    resident = 4 * (_round_up(d, 8) + 8) * hid_lane      # w1^T + stacked (b1,w2)

    def fits(tb):
        x_tile = 4 * tb * d_lane                         # (tb, d) f32
        o_tile = 4 * tb * 128                            # (tb, 1) pads to 128 lanes
        h_tmp = 4 * tb * hid_lane                        # (tb, hid) intermediate
        return resident + 2 * (x_tile + o_tile) + h_tmp <= budget_bytes

    if B <= 256:
        tb = _round_up(B, 8)                             # single tile
        if fits(tb):
            return tb

    best = 128
    for tb in (8192, 4096, 2048, 1024, 512, 256, 128):
        if B > 256 and tb >= B:
            # Keep >= 2 grid steps so the "parallel" axis can split across both
            # v7x TensorCores (and the pipeline has something to overlap).
            continue
        if fits(tb):
            best = tb
            break
    # TODO(synk): if resident w1^T alone exceeds the budget (very large d), add
    # a hid/d grid axis + output accumulator instead of keeping w1^T resident.
    return best


def _make_call(B, d, hid, tile_b, vmem_limit, buffered_weights):
    weight_kw = {}
    if buffered_weights:
        # Constant-index blocks: single-buffer (default double-buffering would
        # allocate a second, never-used copy of w1^T / (b1,w2)).
        weight_kw = dict(pipeline_mode=pl.Buffered(1))

    cost = pl.CostEstimate(
        flops=2 * B * d * hid + 2 * B * hid,
        transcendentals=0,
        bytes_accessed=4 * (B * d + d * hid + 2 * hid + 1 + B),
    )

    return pl.pallas_call(
        mlp_kernel,
        out_shape=jax.ShapeDtypeStruct((B, 1), jnp.float32),
        grid=(pl.cdiv(B, tile_b),),                       # ragged tail is masked
        in_specs=[
            pl.BlockSpec((tile_b, d), lambda i: (i, 0)),              # x (streamed)
            pl.BlockSpec((d, hid), lambda i: (0, 0), **weight_kw),    # w1^T resident
            pl.BlockSpec((2, hid), lambda i: (0, 0), **weight_kw),    # (b1, w2)
            pl.BlockSpec(memory_space=pltpu.MemorySpace.SMEM),        # b2 scalar
        ],
        out_specs=pl.BlockSpec((tile_b, 1), lambda i: (i, 0)),
        compiler_params=pltpu.CompilerParams(
            dimension_semantics=("parallel",),            # megacore split on v7x
            vmem_limit_bytes=vmem_limit,
        ),
        cost_estimate=cost,
    )


def net_forward(x, w1, b1, w2, b2):
    """x: (B, d) f32. PyTorch nn.Linear parameter shapes:
    w1: (10d, d), b1: (10d,), w2: (1, 10d), b2: (1,).  Returns (B, 1) f32."""
    B, d = x.shape
    hid = w1.shape[0]

    # One-time parameter massaging (amortised over the whole batch):
    #   * w1 -> (d, hid): one small HBM pass, removes any in-kernel transposes.
    #   * b1 & w2 stacked into a single (2, hid) block: one DMA, one buffer.
    w1t = jnp.transpose(w1)                               # (d, hid)
    bw = jnp.concatenate([b1.reshape(1, hid), w2.reshape(1, hid)], axis=0)
    b2_s = b2.reshape((1,))                               # true scalar -> SMEM

    vmem_limit = _vmem_budget_bytes()
    tile_b = _pick_tile_b(B, d, hid, budget_bytes=int(vmem_limit * 0.85))

    # TODO(synk): for large d (matmul-bound), casting x/w1t tiles to bf16 while
    # keeping f32 accumulation is a ~3x MXU win on v6e/v7x if bit-level fp32
    # parity with torch is not required.

    args = (x, w1t, bw, b2_s)
    try:
        return _make_call(B, d, hid, tile_b, vmem_limit, True)(*args)
    except Exception:
        # Fallback for Pallas versions without Buffered(1) on constant blocks.
        return _make_call(B, d, hid, tile_b, vmem_limit, False)(*args)


if __name__ == "__main__":
    key = jax.random.PRNGKey(0)
    kx, k1, k2, k3, k4, kx2 = jax.random.split(key, 6)

    d = 32                                   # small shapes consistent with Net(d)
    hid = 10 * d

    # Deterministic synthetic parameters (PyTorch nn.Linear shapes).
    w1 = jax.random.normal(k1, (hid, d), dtype=jnp.float32) * 0.05
    b1 = jax.random.normal(k2, (hid,), dtype=jnp.float32) * 0.05
    w2 = jax.random.normal(k3, (1, hid), dtype=jnp.float32) * 0.05
    b2 = jax.random.normal(k4, (1,), dtype=jnp.float32) * 0.05

    def ref_forward(xx):                     # pure-JAX reference of the forward
        return (jnp.maximum(xx @ w1.T + b1, 0.0) @ w2.T + b2).astype(jnp.float32)

    # 1) Small single-tile case.
    x = jax.random.normal(kx, (8, d), dtype=jnp.float32)
    out = jax.block_until_ready(net_forward(x, w1, b1, w2, b2))
    assert out.shape == (8, 1) and out.dtype == jnp.float32
    assert jnp.allclose(out, ref_forward(x), atol=1e-4, rtol=1e-4)

    # 2) Ragged multi-tile case (B not a multiple of the batch tile): exercises
    #    the pad-free cdiv grid with masked tail reads/writes.
    x2 = jax.random.normal(kx2, (300, d), dtype=jnp.float32)
    out2 = jax.block_until_ready(net_forward(x2, w1, b1, w2, b2))
    assert out2.shape == (300, 1) and out2.dtype == jnp.float32
    assert jnp.allclose(out2, ref_forward(x2), atol=1e-4, rtol=1e-4)

    print("KERNEL_OK")
</pallas_src>

<mosaic_0001>
module attributes {stable_mosaic.version = 11 : i64} {
  func.func @mlp_kernel(%arg0: i32, %arg1: memref<8x32xf32, #tpu.memory_space<vmem>>, %arg2: memref<32x320xf32, #tpu.memory_space<vmem>>, %arg3: memref<2x320xf32, #tpu.memory_space<vmem>>, %arg4: memref<1xf32, #tpu.memory_space<smem>>, %arg5: memref<8x1xf32, #tpu.memory_space<vmem>>) attributes {dimension_semantics = [#tpu.dimension_semantics<parallel>], iteration_bounds = array<i64: 1>, scalar_prefetch = 0 : i64, scratch_operands = 0 : i64, tpu.core_type = #tpu.core_type<tc>, window_params = [{transform_indices = @transform_0, window_bounds = array<i64: 8, 32>}, {pipeline_mode = #tpu.pipeline_mode<synchronous>, transform_indices = @transform_1, window_bounds = array<i64: 32, 320>}, {pipeline_mode = #tpu.pipeline_mode<synchronous>, transform_indices = @transform_2, window_bounds = array<i64: 2, 320>}, {transform_indices = @transform_3, window_bounds = array<i64: 1>}, {transform_indices = @transform_4, window_bounds = array<i64: 8, 1>}]} {
    %c0 = arith.constant 0 : index
    %c0_0 = arith.constant 0 : index
    %0 = vector.load %arg1[%c0, %c0_0] : memref<8x32xf32, #tpu.memory_space<vmem>>, vector<8x32xf32>
    %c0_1 = arith.constant 0 : index
    %c0_2 = arith.constant 0 : index
    %1 = vector.load %arg2[%c0_1, %c0_2] : memref<32x320xf32, #tpu.memory_space<vmem>>, vector<32x320xf32>
    %cst = arith.constant dense<0.000000e+00> : vector<8x320xf32>
    %2 = tpu.matmul %0, %1, %cst {dimension_numbers = #tpu.dot_dimension_numbers<[1], [0], [0], [1], [0, 0, 1, 1], [], []>} : vector<8x32xf32>, vector<32x320xf32>, vector<8x320xf32> -> vector<8x320xf32>
    %c0_3 = arith.constant 0 : index
    %c0_4 = arith.constant 0 : index
    %3 = vector.load %arg3[%c0_3, %c0_4] : memref<2x320xf32, #tpu.memory_space<vmem>>, vector<1x320xf32>
    %c1 = arith.constant 1 : index
    %c0_5 = arith.constant 0 : index
    %4 = vector.load %arg3[%c1, %c0_5] : memref<2x320xf32, #tpu.memory_space<vmem>>, vector<1x320xf32>
    %5 = vector.broadcast %3 : vector<1x320xf32> to vector<8x320xf32>
    %6 = arith.addf %2, %5 : vector<8x320xf32>
    %cst_6 = arith.constant 0.000000e+00 : f32
    %7 = vector.broadcast %cst_6 : f32 to vector<8x320xf32>
    %8 = arith.maximumf %6, %7 : vector<8x320xf32>
    %9 = vector.broadcast %4 : vector<1x320xf32> to vector<8x320xf32>
    %10 = arith.mulf %8, %9 : vector<8x320xf32>
    %cst_7 = arith.constant dense<0.000000e+00> : vector<8xf32>
    %11 = vector.multi_reduction <add>, %10, %cst_7 [1] : vector<8x320xf32> to vector<8xf32>
    %12 = vector.shape_cast %11 : vector<8xf32> to vector<8x1xf32>
    %c0_8 = arith.constant 0 : index
    %13 = memref.load %arg4[%c0_8] : memref<1xf32, #tpu.memory_space<smem>>
    %14 = vector.broadcast %13 : f32 to vector<8x1xf32>
    %15 = arith.addf %12, %14 : vector<8x1xf32>
    %c0_9 = arith.constant 0 : index
    %c0_10 = arith.constant 0 : index
    %16 = vector.load %arg5[%c0_9, %c0_10] : memref<8x1xf32, #tpu.memory_space<vmem>>, vector<8x1xf32>
    tpu.vector_store %arg5[%c0_9, %c0_10], %15 {strides = array<i32>} : memref<8x1xf32, #tpu.memory_space<vmem>>, vector<8x1xf32>,
    return
  }
  func.func @transform_0(%arg0: i32) -> (i32, i32) {
    %c0_i32 = arith.constant 0 : i32
    %c0_i32_0 = arith.constant 0 : i32
    return %arg0, %c0_i32 : i32, i32
  }
  func.func @transform_1(%arg0: i32) -> (i32, i32) {
    %c0_i32 = arith.constant 0 : i32
    %c0_i32_0 = arith.constant 0 : i32
    %c0_i32_1 = arith.constant 0 : i32
    return %c0_i32, %c0_i32_0 : i32, i32
  }
  func.func @transform_2(%arg0: i32) -> (i32, i32) {
    %c0_i32 = arith.constant 0 : i32
    %c0_i32_0 = arith.constant 0 : i32
    %c0_i32_1 = arith.constant 0 : i32
    return %c0_i32, %c0_i32_0 : i32, i32
  }
  func.func @transform_3(%arg0: i32) -> i32 {
    %c0_i32 = arith.constant 0 : i32
    %c0_i32_0 = arith.constant 0 : i32
    return %c0_i32 : i32
  }
  func.func @transform_4(%arg0: i32) -> (i32, i32) {
    %c0_i32 = arith.constant 0 : i32
    %c0_i32_0 = arith.constant 0 : i32
    return %arg0, %c0_i32 : i32, i32
  }
}

module attributes {stable_mosaic.version = 11 : i64} {
  func.func @mlp_kernel(%arg0: i32, %arg1: memref<8x32xf32, #tpu.memory_space<vmem>>, %arg2: memref<32x320xf32, #tpu.memory_space<vmem>>, %arg3: memref<2x320xf32, #tpu.memory_space<vmem>>, %arg4: memref<1xf32, #tpu.memory_space<smem>>, %arg5: memref<8x1xf32, #tpu.memory_space<vmem>>) attributes {dimension_semantics = [#tpu.dimension_semantics<parallel>], iteration_bounds = array<i64: 1>, scalar_prefetch = 0 : i64, scratch_operands = 0 : i64, tpu.core_type = #tpu.core_type<tc>, window_params = [{transform_indices = @transform_0, window_bounds = array<i64: 8, 32>}, {pipeline_mode = #tpu.pipeline_mode<synchronous>, transform_indices = @transform_1, window_bounds = array<i64: 32, 320>}, {pipeline_mode = #tpu.pipeline_mode<synchronous>, transform_indices = @transform_2, window_bounds = array<i64: 2, 320>}, {transform_indices = @transform_3, window_bounds = array<i64: 1>}, {transform_indices = @transform_4, window_bounds = array<i64: 8, 1>}]} {
    %c0 = arith.constant 0 : index
    %c0_0 = arith.constant 0 : index
    %0 = vector.load %arg1[%c0, %c0_0] : memref<8x32xf32, #tpu.memory_space<vmem>>, vector<8x32xf32>
    %c0_1 = arith.constant 0 : index
    %c0_2 = arith.constant 0 : index
    %1 = vector.load %arg2[%c0_1, %c0_2] : memref<32x320xf32, #tpu.memory_space<vmem>>, vector<32x320xf32>
    %cst = arith.constant dense<0.000000e+00> : vector<8x320xf32>
    %2 = tpu.matmul %0, %1, %cst {dimension_numbers = #tpu.dot_dimension_numbers<[1], [0], [0], [1], [0, 0, 1, 1], [], []>} : vector<8x32xf32>, vector<32x320xf32>, vector<8x320xf32> -> vector<8x320xf32>
    %c0_3 = arith.constant 0 : index
    %c0_4 = arith.constant 0 : index
    %3 = vector.load %arg3[%c0_3, %c0_4] : memref<2x320xf32, #tpu.memory_space<vmem>>, vector<1x320xf32>
    %c1 = arith.constant 1 : index
    %c0_5 = arith.constant 0 : index
    %4 = vector.load %arg3[%c1, %c0_5] : memref<2x320xf32, #tpu.memory_space<vmem>>, vector<1x320xf32>
    %5 = vector.broadcast %3 : vector<1x320xf32> to vector<8x320xf32>
    %6 = arith.addf %2, %5 : vector<8x320xf32>
    %cst_6 = arith.constant 0.000000e+00 : f32
    %7 = vector.broadcast %cst_6 : f32 to vector<8x320xf32>
    %8 = arith.maximumf %6, %7 : vector<8x320xf32>
    %9 = vector.broadcast %4 : vector<1x320xf32> to vector<8x320xf32>
    %10 = arith.mulf %8, %9 : vector<8x320xf32>
    %cst_7 = arith.constant dense<0.000000e+00> : vector<8xf32>
    %11 = vector.multi_reduction <add>, %10, %cst_7 [1] : vector<8x320xf32> to vector<8xf32>
    %12 = vector.shape_cast %11 : vector<8xf32> to vector<8x1xf32>
    %c0_8 = arith.constant 0 : index
    %13 = memref.load %arg4[%c0_8] : memref<1xf32, #tpu.memory_space<smem>>
    %14 = vector.broadcast %13 : f32 to vector<8x1xf32>
    %15 = arith.addf %12, %14 : vector<8x1xf32>
    %c0_9 = arith.constant 0 : index
    %c0_10 = arith.constant 0 : index
    %16 = vector.load %arg5[%c0_9, %c0_10] : memref<8x1xf32, #tpu.memory_space<vmem>>, vector<8x1xf32>
    tpu.vector_store %arg5[%c0_9, %c0_10], %15 {strides = array<i32>} : memref<8x1xf32, #tpu.memory_space<vmem>>, vector<8x1xf32>,
    return
  }
  func.func @transform_0(%arg0: i32) -> (i32, i32) {
    %c0_i32 = arith.constant 0 : i32
    %c0_i32_0 = arith.constant 0 : i32
    return %arg0, %c0_i32 : i32, i32
  }
  func.func @transform_1(%arg0: i32) -> (i32, i32) {
    %c0_i32 = arith.constant 0 : i32
    %c0_i32_0 = arith.constant 0 : i32
    %c0_i32_1 = arith.constant 0 : i32
    return %c0_i32, %c0_i32_0 : i32, i32
  }
  func.func @transform_2(%arg0: i32) -> (i32, i32) {
    %c0_i32 = arith.constant 0 : i32
    %c0_i32_0 = arith.constant 0 : i32
    %c0_i32_1 = arith.constant 0 : i32
    return %c0_i32, %c0_i32_0 : i32, i32
  }
  func.func @transform_3(%arg0: i32) -> i32 {
    %c0_i32 = arith.constant 0 : i32
    %c0_i32_0 = arith.constant 0 : i32
    return %c0_i32 : i32
  }
  func.func @transform_4(%arg0: i32) -> (i32, i32) {
    %c0_i32 = arith.constant 0 : i32
    %c0_i32_0 = arith.constant 0 : i32
    return %arg0, %c0_i32 : i32, i32
  }
}

</mosaic_0001>

<llo_original>
// kernel: tpu_custom_call.1
$region0: #{tpu_custom_call.1}
  #allocation0 [shape = 'u32[]', space=smem, size = 0x4, offset = 0x4, fixed_abs, tag = 'smem constant byte address 0x4 - core index']
  #allocation1 [shape = 'u32[144,128]{1,0:T(1,128)}', space=vmem, size = 0x12000, scoped, tag = 'internal scratch']
  #allocation2 [shape = 'f32[1]{0:T(128)S(6)}', space=smem, size = 0x200, scoped, tag = 'scoped memory for tpu_custom_call.1']
  %s0 = inlined_call_operand.hbm [shape: f32[8,32], index: 0, kind: input, shape index: {}]
  %s1 = inlined_call_operand.hbm [shape: f32[32,320], index: 1, kind: input, shape index: {}]
  %s2 = inlined_call_operand.vmem [shape: f32[2,320], index: 2, kind: input, shape index: {}]
  %s3 = inlined_call_operand.<no memory space> [shape: f32[1], index: 3, kind: input, shape index: {}]
  %s4 = inlined_call_operand.vmem [shape: f32[8,1], index: 4, kind: output, shape index: {}]
  %s5 = sld [smem:[#allocation0]]
  $region34: #{tpu_custom_call.1} parent=0
    _
  %s7 = ssub.s32 1, %s5
  %s8 = scalar_select 0, %s7, %s5
  %9 = sst [smem:[#allocation2]] %s3
  $region1: #{tpu_custom_call.1} parent=0
    #allocation3 [shape = 'u8[4096]{0}', space=vmem, size = 0x1000, scoped, tag = 'input window, operand 0, single buffered']
    #allocation4 [shape = 's32[1]{0}', space=sflag, size = 0x4, scoped, tag = 'scoped memory for tpu_custom_call.1']
    #allocation5 [shape = 'u8[49152]{0}', space=vmem, size = 0xc000, scoped, tag = 'input window, operand 1, single buffered']
    #allocation6 [shape = 's32[1]{0}', space=sflag, size = 0x4, scoped, tag = 'scoped memory for tpu_custom_call.1']
    %10 = vsyncpa [#allocation4], 0
    %11 = vsyncpa [#allocation6], 0
    // Predicated region
    $region2: #{tpu_custom_call.1} parent=1 // pred_check
      _
    $region3: #{tpu_custom_call.1} parent=1 // pred_check_branch
      %13 = sbr.rel (0) target = $region5
    $region4: #{tpu_custom_call.1} parent=1 // pred_region
      %s15 = ssub.s32 128, 128
      %16 = vsyncadd [#allocation4], %s15
      %s18 = sshll.u32 [#allocation3], 4
      %s19 = int_to_ptr.vmem [resolvable:$true] %s18
      %21 = dma.hbm_to_vmem [thread:$0]  %s0, 128, %s19, [#allocation4]
    $region5: #{tpu_custom_call.1} parent=1 // pred_fallthru
      _
    // Predicated region
    $region6: #{tpu_custom_call.1} parent=1 // pred_check
      _
    $region7: #{tpu_custom_call.1} parent=1 // pred_check_branch
      %23 = sbr.rel (0) target = $region9
    $region8: #{tpu_custom_call.1} parent=1 // pred_region
      %s25 = ssub.s32 1536, 1536
      %26 = vsyncadd [#allocation6], %s25
      %s27 = sshll.u32 [#allocation5], 4
      %s28 = int_to_ptr.vmem [resolvable:$true] %s27
      %33 = dma.hbm_to_vmem [thread:$0]  %s1, 1536, %s28, [#allocation6], 384, 384, 24
    $region9: #{tpu_custom_call.1} parent=1 // pred_fallthru
      _
    // Predicated region
    $region10: #{tpu_custom_call.1} parent=1 // pred_check
      _
    $region11: #{tpu_custom_call.1} parent=1 // pred_check_branch
      %35 = sbr.rel (0) target = $region13
    $region12: #{tpu_custom_call.1} parent=1 // pred_region
      _
    $region13: #{tpu_custom_call.1} parent=1 // pred_fallthru
      _
    // Predicated region
    $region14: #{tpu_custom_call.1} parent=1 // pred_check
      _
    $region15: #{tpu_custom_call.1} parent=1 // pred_check_branch
      %37 = sbr.rel (0) target = $region17
    $region16: #{tpu_custom_call.1} parent=1 // pred_region
      _
    $region17: #{tpu_custom_call.1} parent=1 // pred_fallthru
      _
    // Predicated region
    $region18: #{tpu_custom_call.1} parent=1 // pred_check
      _
    $region19: #{tpu_custom_call.1} parent=1 // pred_check_branch
      %39 = sbr.rel (0) target = $region21
    $region20: #{tpu_custom_call.1} parent=1 // pred_region
      %40 = dma.done [#allocation4], 128
    $region21: #{tpu_custom_call.1} parent=1 // pred_fallthru
      _
    // Predicated region
    $region22: #{tpu_custom_call.1} parent=1 // pred_check
      _
    $region23: #{tpu_custom_call.1} parent=1 // pred_check_branch
      %42 = sbr.rel (0) target = $region25
    $region24: #{tpu_custom_call.1} parent=1 // pred_region
      %43 = dma.done [#allocation6], 1536
    $region25: #{tpu_custom_call.1} parent=1 // pred_fallthru
      _
    %v44 = vld [vmem:[#allocation3] sm:$0xff]
    %v45 = vld [vmem:[#allocation5] sm:$0xff]
    %v46 = vld [vmem:[#allocation5 + $0x8] sm:$0xff]
    %v47 = vld [vmem:[#allocation5 + $0x10] sm:$0xff]
    %v48 = vld [vmem:[#allocation5 + $0x18] sm:$0xff]
    %v49 = vld [vmem:[#allocation5 + $0x20] sm:$0xff]
    %v50 = vld [vmem:[#allocation5 + $0x28] sm:$0xff]
    %v51 = vld [vmem:[#allocation5 + $0x30] sm:$0xff]
    %v52 = vld [vmem:[#allocation5 + $0x38] sm:$0xff]
    %v53 = vld [vmem:[#allocation5 + $0x40] sm:$0xff]
    %v54 = vld [vmem:[#allocation5 + $0x48] sm:$0xff]
    %v55 = vld [vmem:[#allocation5 + $0x50] sm:$0xff]
    %v56 = vld [vmem:[#allocation5 + $0x58] sm:$0xff]
    %v57 = vld [vmem:[%s2] ss:$2 sm:$0x7]
    %s58 = scalar_lea.vmem %s2, 1
    %v59 = vld [vmem:[%s58] ss:$2 sm:$0x7]
    %v61 = vlaneseq
    %v62 = vshrl.u32 %v61, 7
    %v63 = vsub.s32 0, %v62
    %v64 = vrot.slane %v57, %v63
    %v65 = vlaneseq
    %v66 = vshrl.u32 %v65, 7
    %v67 = vsub.s32 1, %v66
    %v68 = vrot.slane %v57, %v67
    %v69 = vlaneseq
    %v70 = vshrl.u32 %v69, 7
    %v71 = vsub.s32 2, %v70
    %v72 = vrot.slane %v57, %v71
    %vm76 = vcmask 261120
    %v78 = vsel %vm76, %v44, 0
    %80 = vmatprep.subr.mxu0 %v46
    %81 = vmatpush1.msra.mxu0 %v45
    %82 = vmatprep.subr.mxu0 %v49
    %83 = vmatpush1.msra.mxu0 %v48
    %84 = vmatprep.subr.mxu0 %v52
    %85 = vmatpush1.msra.mxu0 %v51
    %86 = vmatprep.subr.mxu0 %v55
    %87 = vmatpush1.msra.mxu0 %v54
    %88 = vmatprep.subr.mxu0 0.0
    %89 = vmatpush1.msra.mxu0 0.0
    %90 = vmatprep.subr.mxu0 0.0
    %91 = vmatpush1.msra.mxu0 0.0
    %92 = vmatprep.subr.mxu0 0.0
    %93 = vmatpush1.msra.mxu0 0.0
    %94 = vmatprep.subr.mxu0 0.0
    %95 = vmatpush1.msra.mxu0 0.0
    %96 = vmatprep.subr.mxu0 0.0
    %97 = vmatpush1.msra.mxu0 0.0
    %98 = vmatprep.subr.mxu0 0.0
    %99 = vmatpush1.msra.mxu0 0.0
    %100 = vmatprep.subr.mxu0 0.0
    %101 = vmatpush1.msra.mxu0 0.0
    %102 = vmatprep.subr.mxu0 0.0
    %103 = vmatpush1.msra.mxu0 0.0
    %104 = vmatprep.subr.mxu0 0.0
    %105 = vmatpush1.msra.mxu0 0.0
    %106 = vmatprep.subr.mxu0 0.0
    %107 = vmatpush1.msra.mxu0 0.0
    %108 = vmatprep.subr.mxu0 0.0
    %109 = vmatpush1.msra.mxu0 0.0
    %110 = vmatprep.subr.mxu0 0.0
    %111 = vmatpush1.msra.mxu0 0.0
    %112 = vmatprep.subr.mxu0 0.0
    %113 = vmatpush1.msra.mxu0 0.0
    %114 = vmatprep.subr.mxu0 0.0
    %115 = vmatpush1.msra.mxu0 0.0
    %116 = vmatprep.subr.mxu0 0.0
    %117 = vmatpush1.msra.mxu0 0.0
    %118 = vmatprep.subr.mxu0 0.0
    %119 = vmatpush1.msra.mxu0 0.0
    %120 = vmatprep.subr.mxu0 0.0
    %121 = vmatpush1.msra.mxu0 0.0
    %122 = vmatprep.subr.mxu0 0.0
    %123 = vmatpush1.msra.mxu0 0.0
    %124 = vmatprep.subr.mxu0 0.0
    %125 = vmatpush1.msra.mxu0 0.0
    %126 = vmatprep.subr.mxu0 0.0
    %127 = vmatpush1.msra.mxu0 0.0
    %128 = vmatprep.subr.mxu0 0.0
    %129 = vmatpush1.msra.mxu0 0.0
    %130 = vmatprep.subr.mxu0 0.0
    %131 = vmatpush1.msra.mxu0 0.0
    %132 = vmatprep.subr.mxu0 0.0
    %133 = vmatpush1.msra.mxu0 0.0
    %134 = vmatprep.subr.mxu0 0.0
    %135 = vmatpush1.msra.mxu0 0.0
    %136 = vmatprep.subr.mxu0 0.0
    %137 = vmatpush1.msra.mxu0 0.0
    %138 = vmatprep.subr.mxu0 0.0
    %139 = vmatpush1.msra.mxu0 0.0
    %140 = vmatprep.subr.mxu0 0.0
    %141 = vmatpush1.msra.mxu0 0.0
    %142 = vmatprep.subr.mxu0 0.0
    %143 = vmatpush1.msra.mxu0 0.0
    %144 = vmatprep.mubr.f32.mxu0 0.0
    %145 = vmatmul.mubr.f32.gmra.mrb[0].mxu0 %v78
    %v146 = vpop.f32.mrb[0].mxu0
    %v147 = vadd.f32 %v64, %v146
    %v148 = vpop.f32.mrb[0].mxu0
    %v149 = vadd.f32 %v68, %v148
    %150 = vdwg.mxu0
    %151 = vmatprep.subr.mxu0 0.0
    %152 = vmatpush1.msra.mxu0 %v47
    %153 = vmatprep.subr.mxu0 0.0
    %154 = vmatpush1.msra.mxu0 %v50
    %155 = vmatprep.subr.mxu0 0.0
    %156 = vmatpush1.msra.mxu0 %v53
    %157 = vmatprep.subr.mxu0 0.0
    %158 = vmatpush1.msra.mxu0 %v56
    %159 = vmatprep.subr.mxu0 0.0
    %160 = vmatpush1.msra.mxu0 0.0
    %161 = vmatprep.subr.mxu0 0.0
    %162 = vmatpush1.msra.mxu0 0.0
    %163 = vmatprep.subr.mxu0 0.0
    %164 = vmatpush1.msra.mxu0 0.0
    %165 = vmatprep.subr.mxu0 0.0
    %166 = vmatpush1.msra.mxu0 0.0
    %167 = vmatprep.subr.mxu0 0.0
    %168 = vmatpush1.msra.mxu0 0.0
    %169 = vmatprep.subr.mxu0 0.0
    %170 = vmatpush1.msra.mxu0 0.0
    %171 = vmatprep.subr.mxu0 0.0
    %172 = vmatpush1.msra.mxu0 0.0
    %173 = vmatprep.subr.mxu0 0.0
    %174 = vmatpush1.msra.mxu0 0.0
    %175 = vmatprep.subr.mxu0 0.0
    %176 = vmatpush1.msra.mxu0 0.0
    %177 = vmatprep.subr.mxu0 0.0
    %178 = vmatpush1.msra.mxu0 0.0
    %179 = vmatprep.subr.mxu0 0.0
    %180 = vmatpush1.msra.mxu0 0.0
    %181 = vmatprep.subr.mxu0 0.0
    %182 = vmatpush1.msra.mxu0 0.0
    %183 = vmatprep.subr.mxu0 0.0
    %184 = vmatpush1.msra.mxu0 0.0
    %185 = vmatprep.subr.mxu0 0.0
    %186 = vmatpush1.msra.mxu0 0.0
    %187 = vmatprep.subr.mxu0 0.0
    %188 = vmatpush1.msra.mxu0 0.0
    %189 = vmatprep.subr.mxu0 0.0
    %190 = vmatpush1.msra.mxu0 0.0
    %191 = vmatprep.subr.mxu0 0.0
    %192 = vmatpush1.msra.mxu0 0.0
    %193 = vmatprep.subr.mxu0 0.0
    %194 = vmatpush1.msra.mxu0 0.0
    %195 = vmatprep.subr.mxu0 0.0
    %196 = vmatpush1.msra.mxu0 0.0
    %197 = vmatprep.subr.mxu0 0.0
    %198 = vmatpush1.msra.mxu0 0.0
    %199 = vmatprep.subr.mxu0 0.0
    %200 = vmatpush1.msra.mxu0 0.0
    %201 = vmatprep.subr.mxu0 0.0
    %202 = vmatpush1.msra.mxu0 0.0
    %203 = vmatprep.subr.mxu0 0.0
    %204 = vmatpush1.msra.mxu0 0.0
    %205 = vmatprep.subr.mxu0 0.0
    %206 = vmatpush1.msra.mxu0 0.0
    %207 = vmatprep.subr.mxu0 0.0
    %208 = vmatpush1.msra.mxu0 0.0
    %209 = vmatprep.subr.mxu0 0.0
    %210 = vmatpush1.msra.mxu0 0.0
    %211 = vmatprep.subr.mxu0 0.0
    %212 = vmatpush1.msra.mxu0 0.0
    %213 = vmatprep.subr.mxu0 0.0
    %214 = vmatpush1.msra.mxu0 0.0
    %215 = vmatprep.mubr.f32.mxu0 0.0
    %216 = vmatmul.mubr.f32.gmra.mrb[0].mxu0 %v78
    %v217 = vpop.f32.mrb[0].mxu0
    %v218 = vadd.f32 %v72, %v217
    %v219 = vpop.f32.mrb[0].mxu0
    %220 = vdwg.mxu0
    %v221 = vmax.f32 %v147, 0.0
    %v222 = vmax.f32 %v149, 0.0
    %v223 = vmax.f32 %v218, 0.0
    %v225 = vlaneseq
    %v226 = vshrl.u32 %v225, 7
    %v227 = vsub.s32 0, %v226
    %v228 = vrot.slane %v59, %v227
    %v229 = vlaneseq
    %v230 = vshrl.u32 %v229, 7
    %v231 = vsub.s32 1, %v230
    %v232 = vrot.slane %v59, %v231
    %v233 = vlaneseq
    %v234 = vshrl.u32 %v233, 7
    %v235 = vsub.s32 2, %v234
    %v236 = vrot.slane %v59, %v235
    %v240 = vmul.f32 %v221, %v228
    %v241 = vmul.f32 %v222, %v232
    %v242 = vmul.f32 %v223, %v236
    %v243 = vadd.f32 %v240, %v241
    %vm244 = vcmask 523264
    %v245 = vsel %vm244, %v242, 0.0
    %v246 = vadd.f32 %v243, %v245
    %247 = vadd.xlane.f32.xlu0 %v246
    %v248 = vpop.xlane.xlu0 %247
    %s249 = sld [smem:[#allocation2]]
    %v250 = vstv %s249
    %v251 = vadd.f32 %v248, %v250
    %vm252 = vcmask 7168
    %253 = vst.msk [vmem:[%s4] sm:$0xff] %vm252, %v251
    // Predicated region
    $region26: #{tpu_custom_call.1} parent=1 // pred_check
      _
    $region27: #{tpu_custom_call.1} parent=1 // pred_check_branch
      %255 = sbr.rel (0) target = $region29
    $region28: #{tpu_custom_call.1} parent=1 // pred_region
      _
    $region29: #{tpu_custom_call.1} parent=1 // pred_fallthru
      _
    // Predicated region
    $region30: #{tpu_custom_call.1} parent=1 // pred_check
      _
    $region31: #{tpu_custom_call.1} parent=1 // pred_check_branch
      %257 = sbr.rel (0) target = $region33
    $region32: #{tpu_custom_call.1} parent=1 // pred_region
      _
    $region33: #{tpu_custom_call.1} parent=1 // pred_fallthru
      _
    %258 = vsyncpa [#allocation4], 1
    %259 = vsyncpa [#allocation6], 1

// kernel: tpu_custom_call.1
$region0: #{tpu_custom_call.1}
  #allocation0 [shape = 'u32[]', space=smem, size = 0x4, offset = 0x4, fixed_abs, tag = 'smem constant byte address 0x4 - core index']
  #allocation1 [shape = 'u32[144,128]{1,0:T(1,128)}', space=vmem, size = 0x12000, scoped, tag = 'internal scratch']
  #allocation2 [shape = 'f32[1]{0:T(128)S(6)}', space=smem, size = 0x200, scoped, tag = 'scoped memory for tpu_custom_call.1']
  %s0 = inlined_call_operand.hbm [shape: f32[8,32], index: 0, kind: input, shape index: {}]
  %s1 = inlined_call_operand.hbm [shape: f32[32,320], index: 1, kind: input, shape index: {}]
  %s2 = inlined_call_operand.vmem [shape: f32[2,320], index: 2, kind: input, shape index: {}]
  %s3 = inlined_call_operand.<no memory space> [shape: f32[1], index: 3, kind: input, shape index: {}]
  %s4 = inlined_call_operand.vmem [shape: f32[8,1], index: 4, kind: output, shape index: {}]
  %s5 = sld [smem:[#allocation0]]
  $region34: #{tpu_custom_call.1} parent=0
    _
  %s7 = ssub.s32 1, %s5
  %s8 = scalar_select 0, %s7, %s5
  %9 = sst [smem:[#allocation2]] %s3
  $region1: #{tpu_custom_call.1} parent=0
    #allocation3 [shape = 'u8[4096]{0}', space=vmem, size = 0x1000, scoped, tag = 'input window, operand 0, single buffered']
    #allocation4 [shape = 's32[1]{0}', space=sflag, size = 0x4, scoped, tag = 'scoped memory for tpu_custom_call.1']
    #allocation5 [shape = 'u8[49152]{0}', space=vmem, size = 0xc000, scoped, tag = 'input window, operand 1, single buffered']
    #allocation6 [shape = 's32[1]{0}', space=sflag, size = 0x4, scoped, tag = 'scoped memory for tpu_custom_call.1']
    %10 = vsyncpa [#allocation4], 0
    %11 = vsyncpa [#allocation6], 0
    // Predicated region
    $region2: #{tpu_custom_call.1} parent=1 // pred_check
      _
    $region3: #{tpu_custom_call.1} parent=1 // pred_check_branch
      %13 = sbr.rel (0) target = $region5
    $region4: #{tpu_custom_call.1} parent=1 // pred_region
      %s15 = ssub.s32 128, 128
      %16 = vsyncadd [#allocation4], %s15
      %s18 = sshll.u32 [#allocation3], 4
      %s19 = int_to_ptr.vmem [resolvable:$true] %s18
      %21 = dma.hbm_to_vmem [thread:$0]  %s0, 128, %s19, [#allocation4]
    $region5: #{tpu_custom_call.1} parent=1 // pred_fallthru
      _
    // Predicated region
    $region6: #{tpu_custom_call.1} parent=1 // pred_check
      _
    $region7: #{tpu_custom_call.1} parent=1 // pred_check_branch
      %23 = sbr.rel (0) target = $region9
    $region8: #{tpu_custom_call.1} parent=1 // pred_region
      %s25 = ssub.s32 1536, 1536
      %26 = vsyncadd [#allocation6], %s25
      %s27 = sshll.u32 [#allocation5], 4
      %s28 = int_to_ptr.vmem [resolvable:$true] %s27
      %33 = dma.hbm_to_vmem [thread:$0]  %s1, 1536, %s28, [#allocation6], 384, 384, 24
    $region9: #{tpu_custom_call.1} parent=1 // pred_fallthru
      _
    // Predicated region
    $region10: #{tpu_custom_call.1} parent=1 // pred_check
      _
    $region11: #{tpu_custom_call.1} parent=1 // pred_check_branch
      %35 = sbr.rel (0) target = $region13
    $region12: #{tpu_custom_call.1} parent=1 // pred_region
      _
    $region13: #{tpu_custom_call.1} parent=1 // pred_fallthru
      _
    // Predicated region
    $region14: #{tpu_custom_call.1} parent=1 // pred_check
      _
    $region15: #{tpu_custom_call.1} parent=1 // pred_check_branch
      %37 = sbr.rel (0) target = $region17
    $region16: #{tpu_custom_call.1} parent=1 // pred_region
      _
    $region17: #{tpu_custom_call.1} parent=1 // pred_fallthru
      _
    // Predicated region
    $region18: #{tpu_custom_call.1} parent=1 // pred_check
      _
    $region19: #{tpu_custom_call.1} parent=1 // pred_check_branch
      %39 = sbr.rel (0) target = $region21
    $region20: #{tpu_custom_call.1} parent=1 // pred_region
      %40 = dma.done [#allocation4], 128
    $region21: #{tpu_custom_call.1} parent=1 // pred_fallthru
      _
    // Predicated region
    $region22: #{tpu_custom_call.1} parent=1 // pred_check
      _
    $region23: #{tpu_custom_call.1} parent=1 // pred_check_branch
      %42 = sbr.rel (0) target = $region25
    $region24: #{tpu_custom_call.1} parent=1 // pred_region
      %43 = dma.done [#allocation6], 1536
    $region25: #{tpu_custom_call.1} parent=1 // pred_fallthru
      _
    %v44 = vld [vmem:[#allocation3] sm:$0xff]
    %v45 = vld [vmem:[#allocation5] sm:$0xff]
    %v46 = vld [vmem:[#allocation5 + $0x8] sm:$0xff]
    %v47 = vld [vmem:[#allocation5 + $0x10] sm:$0xff]
    %v48 = vld [vmem:[#allocation5 + $0x18] sm:$0xff]
    %v49 = vld [vmem:[#allocation5 + $0x20] sm:$0xff]
    %v50 = vld [vmem:[#allocation5 + $0x28] sm:$0xff]
    %v51 = vld [vmem:[#allocation5 + $0x30] sm:$0xff]
    %v52 = vld [vmem:[#allocation5 + $0x38] sm:$0xff]
    %v53 = vld [vmem:[#allocation5 + $0x40] sm:$0xff]
    %v54 = vld [vmem:[#allocation5 + $0x48] sm:$0xff]
    %v55 = vld [vmem:[#allocation5 + $0x50] sm:$0xff]
    %v56 = vld [vmem:[#allocation5 + $0x58] sm:$0xff]
    %v57 = vld [vmem:[%s2] ss:$2 sm:$0x7]
    %s58 = scalar_lea.vmem %s2, 1
    %v59 = vld [vmem:[%s58] ss:$2 sm:$0x7]
    %v61 = vlaneseq
    %v62 = vshrl.u32 %v61, 7
    %v63 = vsub.s32 0, %v62
    %v64 = vrot.slane %v57, %v63
    %v65 = vlaneseq
    %v66 = vshrl.u32 %v65, 7
    %v67 = vsub.s32 1, %v66
    %v68 = vrot.slane %v57, %v67
    %v69 = vlaneseq
    %v70 = vshrl.u32 %v69, 7
    %v71 = vsub.s32 2, %v70
    %v72 = vrot.slane %v57, %v71
    %vm76 = vcmask 261120
    %v78 = vsel %vm76, %v44, 0
    %80 = vmatprep.subr.mxu0 %v46
    %81 = vmatpush1.msra.mxu0 %v45
    %82 = vmatprep.subr.mxu0 %v49
    %83 = vmatpush1.msra.mxu0 %v48
    %84 = vmatprep.subr.mxu0 %v52
    %85 = vmatpush1.msra.mxu0 %v51
    %86 = vmatprep.subr.mxu0 %v55
    %87 = vmatpush1.msra.mxu0 %v54
    %88 = vmatprep.subr.mxu0 0.0
    %89 = vmatpush1.msra.mxu0 0.0
    %90 = vmatprep.subr.mxu0 0.0
    %91 = vmatpush1.msra.mxu0 0.0
    %92 = vmatprep.subr.mxu0 0.0
    %93 = vmatpush1.msra.mxu0 0.0
    %94 = vmatprep.subr.mxu0 0.0
    %95 = vmatpush1.msra.mxu0 0.0
    %96 = vmatprep.subr.mxu0 0.0
    %97 = vmatpush1.msra.mxu0 0.0
    %98 = vmatprep.subr.mxu0 0.0
    %99 = vmatpush1.msra.mxu0 0.0
    %100 = vmatprep.subr.mxu0 0.0
    %101 = vmatpush1.msra.mxu0 0.0
    %102 = vmatprep.subr.mxu0 0.0
    %103 = vmatpush1.msra.mxu0 0.0
    %104 = vmatprep.subr.mxu0 0.0
    %105 = vmatpush1.msra.mxu0 0.0
    %106 = vmatprep.subr.mxu0 0.0
    %107 = vmatpush1.msra.mxu0 0.0
    %108 = vmatprep.subr.mxu0 0.0
    %109 = vmatpush1.msra.mxu0 0.0
    %110 = vmatprep.subr.mxu0 0.0
    %111 = vmatpush1.msra.mxu0 0.0
    %112 = vmatprep.subr.mxu0 0.0
    %113 = vmatpush1.msra.mxu0 0.0
    %114 = vmatprep.subr.mxu0 0.0
    %115 = vmatpush1.msra.mxu0 0.0
    %116 = vmatprep.subr.mxu0 0.0
    %117 = vmatpush1.msra.mxu0 0.0
    %118 = vmatprep.subr.mxu0 0.0
    %119 = vmatpush1.msra.mxu0 0.0
    %120 = vmatprep.subr.mxu0 0.0
    %121 = vmatpush1.msra.mxu0 0.0
    %122 = vmatprep.subr.mxu0 0.0
    %123 = vmatpush1.msra.mxu0 0.0
    %124 = vmatprep.subr.mxu0 0.0
    %125 = vmatpush1.msra.mxu0 0.0
    %126 = vmatprep.subr.mxu0 0.0
    %127 = vmatpush1.msra.mxu0 0.0
    %128 = vmatprep.subr.mxu0 0.0
    %129 = vmatpush1.msra.mxu0 0.0
    %130 = vmatprep.subr.mxu0 0.0
    %131 = vmatpush1.msra.mxu0 0.0
    %132 = vmatprep.subr.mxu0 0.0
    %133 = vmatpush1.msra.mxu0 0.0
    %134 = vmatprep.subr.mxu0 0.0
    %135 = vmatpush1.msra.mxu0 0.0
    %136 = vmatprep.subr.mxu0 0.0
    %137 = vmatpush1.msra.mxu0 0.0
    %138 = vmatprep.subr.mxu0 0.0
    %139 = vmatpush1.msra.mxu0 0.0
    %140 = vmatprep.subr.mxu0 0.0
    %141 = vmatpush1.msra.mxu0 0.0
    %142 = vmatprep.subr.mxu0 0.0
    %143 = vmatpush1.msra.mxu0 0.0
    %144 = vmatprep.mubr.f32.mxu0 0.0
    %145 = vmatmul.mubr.f32.gmra.mrb[0].mxu0 %v78
    %v146 = vpop.f32.mrb[0].mxu0
    %v147 = vadd.f32 %v64, %v146
    %v148 = vpop.f32.mrb[0].mxu0
    %v149 = vadd.f32 %v68, %v148
    %150 = vdwg.mxu0
    %151 = vmatprep.subr.mxu0 0.0
    %152 = vmatpush1.msra.mxu0 %v47
    %153 = vmatprep.subr.mxu0 0.0
    %154 = vmatpush1.msra.mxu0 %v50
    %155 = vmatprep.subr.mxu0 0.0
    %156 = vmatpush1.msra.mxu0 %v53
    %157 = vmatprep.subr.mxu0 0.0
    %158 = vmatpush1.msra.mxu0 %v56
    %159 = vmatprep.subr.mxu0 0.0
    %160 = vmatpush1.msra.mxu0 0.0
    %161 = vmatprep.subr.mxu0 0.0
    %162 = vmatpush1.msra.mxu0 0.0
    %163 = vmatprep.subr.mxu0 0.0
    %164 = vmatpush1.msra.mxu0 0.0
    %165 = vmatprep.subr.mxu0 0.0
    %166 = vmatpush1.msra.mxu0 0.0
    %167 = vmatprep.subr.mxu0 0.0
    %168 = vmatpush1.msra.mxu0 0.0
    %169 = vmatprep.subr.mxu0 0.0
    %170 = vmatpush1.msra.mxu0 0.0
    %171 = vmatprep.subr.mxu0 0.0
    %172 = vmatpush1.msra.mxu0 0.0
    %173 = vmatprep.subr.mxu0 0.0
    %174 = vmatpush1.msra.mxu0 0.0
    %175 = vmatprep.subr.mxu0 0.0
    %176 = vmatpush1.msra.mxu0 0.0
    %177 = vmatprep.subr.mxu0 0.0
    %178 = vmatpush1.msra.mxu0 0.0
    %179 = vmatprep.subr.mxu0 0.0
    %180 = vmatpush1.msra.mxu0 0.0
    %181 = vmatprep.subr.mxu0 0.0
    %182 = vmatpush1.msra.mxu0 0.0
    %183 = vmatprep.subr.mxu0 0.0
    %184 = vmatpush1.msra.mxu0 0.0
    %185 = vmatprep.subr.mxu0 0.0
    %186 = vmatpush1.msra.mxu0 0.0
    %187 = vmatprep.subr.mxu0 0.0
    %188 = vmatpush1.msra.mxu0 0.0
    %189 = vmatprep.subr.mxu0 0.0
    %190 = vmatpush1.msra.mxu0 0.0
    %191 = vmatprep.subr.mxu0 0.0
    %192 = vmatpush1.msra.mxu0 0.0
    %193 = vmatprep.subr.mxu0 0.0
    %194 = vmatpush1.msra.mxu0 0.0
    %195 = vmatprep.subr.mxu0 0.0
    %196 = vmatpush1.msra.mxu0 0.0
    %197 = vmatprep.subr.mxu0 0.0
    %198 = vmatpush1.msra.mxu0 0.0
    %199 = vmatprep.subr.mxu0 0.0
    %200 = vmatpush1.msra.mxu0 0.0
    %201 = vmatprep.subr.mxu0 0.0
    %202 = vmatpush1.msra.mxu0 0.0
    %203 = vmatprep.subr.mxu0 0.0
    %204 = vmatpush1.msra.mxu0 0.0
    %205 = vmatprep.subr.mxu0 0.0
    %206 = vmatpush1.msra.mxu0 0.0
    %207 = vmatprep.subr.mxu0 0.0
    %208 = vmatpush1.msra.mxu0 0.0
    %209 = vmatprep.subr.mxu0 0.0
    %210 = vmatpush1.msra.mxu0 0.0
    %211 = vmatprep.subr.mxu0 0.0
    %212 = vmatpush1.msra.mxu0 0.0
    %213 = vmatprep.subr.mxu0 0.0
    %214 = vmatpush1.msra.mxu0 0.0
    %215 = vmatprep.mubr.f32.mxu0 0.0
    %216 = vmatmul.mubr.f32.gmra.mrb[0].mxu0 %v78
    %v217 = vpop.f32.mrb[0].mxu0
    %v218 = vadd.f32 %v72, %v217
    %v219 = vpop.f32.mrb[0].mxu0
    %220 = vdwg.mxu0
    %v221 = vmax.f32 %v147, 0.0
    %v222 = vmax.f32 %v149, 0.0
    %v223 = vmax.f32 %v218, 0.0
    %v225 = vlaneseq
    %v226 = vshrl.u32 %v225, 7
    %v227 = vsub.s32 0, %v226
    %v228 = vrot.slane %v59, %v227
    %v229 = vlaneseq
    %v230 = vshrl.u32 %v229, 7
    %v231 = vsub.s32 1, %v230
    %v232 = vrot.slane %v59, %v231
    %v233 = vlaneseq
    %v234 = vshrl.u32 %v233, 7
    %v235 = vsub.s32 2, %v234
    %v236 = vrot.slane %v59, %v235
    %v240 = vmul.f32 %v221, %v228
    %v241 = vmul.f32 %v222, %v232
    %v242 = vmul.f32 %v223, %v236
    %v243 = vadd.f32 %v240, %v241
    %vm244 = vcmask 523264
    %v245 = vsel %vm244, %v242, 0.0
    %v246 = vadd.f32 %v243, %v245
    %247 = vadd.xlane.f32.xlu0 %v246
    %v248 = vpop.xlane.xlu0 %247
    %s249 = sld [smem:[#allocation2]]
    %v250 = vstv %s249
    %v251 = vadd.f32 %v248, %v250
    %vm252 = vcmask 7168
    %253 = vst.msk [vmem:[%s4] sm:$0xff] %vm252, %v251
    // Predicated region
    $region26: #{tpu_custom_call.1} parent=1 // pred_check
      _
    $region27: #{tpu_custom_call.1} parent=1 // pred_check_branch
      %255 = sbr.rel (0) target = $region29
    $region28: #{tpu_custom_call.1} parent=1 // pred_region
      _
    $region29: #{tpu_custom_call.1} parent=1 // pred_fallthru
      _
    // Predicated region
    $region30: #{tpu_custom_call.1} parent=1 // pred_check
      _
    $region31: #{tpu_custom_call.1} parent=1 // pred_check_branch
      %257 = sbr.rel (0) target = $region33
    $region32: #{tpu_custom_call.1} parent=1 // pred_region
      _
    $region33: #{tpu_custom_call.1} parent=1 // pred_fallthru
      _
    %258 = vsyncpa [#allocation4], 1
    %259 = vsyncpa [#allocation6], 1

</llo_original>
